<compile_context>
chip_gen: v7x
topology: tpu7x:2x2x1
jax: 0.10.0
libtpu: 0.0.40
codegen_flags: <defaults>
</compile_context>

<pallas_src>
import functools

import jax
import jax.numpy as jnp
from jax import lax
from jax.experimental import pallas as pl
from jax.experimental.pallas import tpu as pltpu

LN_EPS = 1e-5
LANE = 128
SUBLANE = 8


def _round_up(n, m):
    return ((n + m - 1) // m) * m


def _pad2d(a, rows, cols):
    return jnp.pad(a, ((0, rows - a.shape[0]), (0, cols - a.shape[1])))


def layernorm_nlp_kernel(x_ref, w1_ref, b1_ref, gamma_ref, beta_ref,
                         w2_ref, b2_ref, w3_ref, b3_ref, out_ref,
                         *, ln_inv):
    # ---- linear_layer: x @ W1 + b1 (bf16 inputs, f32 accumulate) -------
    h = jnp.dot(x_ref[...], w1_ref[...],
                preferred_element_type=jnp.float32) + b1_ref[...]

    # ---- norm_layer: LayerNorm (biased var, eps=1e-5) + Tanh -----------
    # Padded feature lanes of h are exactly zero (zero-padded W1 columns and
    # b1), so summing the full padded width and dividing by the TRUE width
    # (ln_inv = 1/d0) gives the correct statistics in a single pass.
    s1 = jnp.sum(h, axis=-1, keepdims=True)
    s2 = jnp.sum(h * h, axis=-1, keepdims=True)
    mu = s1 * ln_inv
    var = s2 * ln_inv - mu * mu
    h = (h - mu) * lax.rsqrt(var + LN_EPS)
    # gamma/beta are zero in padded lanes -> padded lanes return to exactly 0.
    h = h * gamma_ref[...] + beta_ref[...]
    h = jnp.tanh(h)

    # ---- mlp_layer: Linear + ReLU, Linear + ReLU -----------------------
    h = jnp.dot(h.astype(w2_ref.dtype), w2_ref[...],
                preferred_element_type=jnp.float32) + b2_ref[...]
    h = jnp.maximum(h, 0.0)
    h = jnp.dot(h.astype(w3_ref.dtype), w3_ref[...],
                preferred_element_type=jnp.float32) + b3_ref[...]
    out_ref[...] = jnp.maximum(h, 0.0)


@functools.partial(jax.jit, static_argnames=("block_batch", "matmul_dtype"))
def layernorm_nlp_forward(x, w1, b1, gamma, beta, w2, b2, w3, b3,
                          *, block_batch=512, matmul_dtype=jnp.bfloat16):
    batch, in_dim = x.shape
    d0 = w1.shape[1]      # LayerNorm width (true, unpadded)
    d2 = w2.shape[1]
    d3 = w3.shape[1]

    # Lane-dense padding of every feature dim (multiples of 128).
    in_p = _round_up(in_dim, LANE)
    d0_p = _round_up(d0, LANE)
    d2_p = _round_up(d2, LANE)
    d3_p = _round_up(d3, LANE)

    # Batch tile: multiple of 8 sublanes, capped at block_batch; batch is
    # padded so the grid divides evenly.  At tb=512 the working set
    # (double-buffered x + out tiles plus resident weights) is well under the
    # 16/32 MiB default scoped-VMEM limits on v5e/v6e/v7x.
    tb = min(block_batch, _round_up(batch, SUBLANE))
    tb = _round_up(tb, SUBLANE)
    b_p = _round_up(batch, tb)

    x_p = _pad2d(x, b_p, in_p).astype(matmul_dtype)
    w1_p = _pad2d(w1, in_p, d0_p).astype(matmul_dtype)
    b1_p = _pad2d(b1, 1, d0_p)
    gamma_p = _pad2d(gamma, 1, d0_p)   # padded lanes -> 0 (kills pad lanes)
    beta_p = _pad2d(beta, 1, d0_p)
    w2_p = _pad2d(w2, d0_p, d2_p).astype(matmul_dtype)
    b2_p = _pad2d(b2, 1, d2_p)
    w3_p = _pad2d(w3, d2_p, d3_p).astype(matmul_dtype)
    b3_p = _pad2d(b3, 1, d3_p)

    def resident(shape):
        # whole-array block, constant index_map -> stays in VMEM across steps
        return pl.BlockSpec(shape, lambda i: (0,) * len(shape))

    kernel = functools.partial(layernorm_nlp_kernel, ln_inv=1.0 / d0)

    out_p = pl.pallas_call(
        kernel,
        out_shape=jax.ShapeDtypeStruct((b_p, d3_p), jnp.float32),
        grid=(b_p // tb,),
        in_specs=[
            pl.BlockSpec((tb, in_p), lambda i: (i, 0)),
            resident(w1_p.shape), resident(b1_p.shape),
            resident(gamma_p.shape), resident(beta_p.shape),
            resident(w2_p.shape), resident(b2_p.shape),
            resident(w3_p.shape), resident(b3_p.shape),
        ],
        out_specs=pl.BlockSpec((tb, d3_p), lambda i: (i, 0)),
        compiler_params=pltpu.CompilerParams(
            dimension_semantics=("parallel",)),
    )(x_p, w1_p, b1_p, gamma_p, beta_p, w2_p, b2_p, w3_p, b3_p)

    return out_p[:batch, :d3]


def init_params(key, num_tasks, output_sizes):
    """Deterministic synthetic parameters matching nn.Linear/LayerNorm shapes."""
    in_dim = 64 + num_tasks
    d0, d1, d2 = output_sizes[0], output_sizes[1], output_sizes[2]
    ks = jax.random.split(key, 6)

    def linear(kw, kb, fan_in, fan_out):
        # PyTorch-style uniform(-1/sqrt(fan_in), 1/sqrt(fan_in)) init
        bound = 1.0 / jnp.sqrt(jnp.float32(fan_in))
        w = jax.random.uniform(kw, (fan_in, fan_out), jnp.float32, -bound, bound)
        b = jax.random.uniform(kb, (1, fan_out), jnp.float32, -bound, bound)
        return w, b

    w1, b1 = linear(ks[0], ks[1], in_dim, d0)
    gamma = jnp.ones((1, d0), jnp.float32)
    beta = jnp.zeros((1, d0), jnp.float32)
    # mlp over output_sizes[1:] == [d1, d2]; sizes [d1, d2, d2]
    w2, b2 = linear(ks[2], ks[3], d1, d2)
    w3, b3 = linear(ks[4], ks[5], d2, d2)
    return w1, b1, gamma, beta, w2, b2, w3, b3


if __name__ == "__main__":
    key = jax.random.PRNGKey(0)
    num_tasks = 4
    # output_sizes[0] must equal output_sizes[1] for the PyTorch module to be
    # shape-consistent (norm output feeds mlp(output_sizes[1:])).
    output_sizes = (32, 32, 32)
    batch = 8
    in_dim = 64 + num_tasks

    k_x, k_p = jax.random.split(key)
    x = jax.random.normal(k_x, (batch, in_dim), jnp.float32)
    params = init_params(k_p, num_tasks, output_sizes)

    # Default (bf16 matmul inputs, f32 accumulate) path.
    out = layernorm_nlp_forward(x, *params)
    jax.block_until_ready(out)

    # Full-f32 path (same kernel, matmul_dtype=f32).
    out_f32 = layernorm_nlp_forward(x, *params, matmul_dtype=jnp.float32)
    jax.block_until_ready(out_f32)

    # Pure-JAX f32 reference (PyTorch semantics).
    w1, b1, gamma, beta, w2, b2, w3, b3 = params
    h = x @ w1 + b1
    mu = h.mean(-1, keepdims=True)
    var = ((h - mu) ** 2).mean(-1, keepdims=True)
    h = jnp.tanh((h - mu) / jnp.sqrt(var + LN_EPS) * gamma + beta)
    h = jnp.maximum(h @ w2 + b2, 0.0)
    ref = jnp.maximum(h @ w3 + b3, 0.0)

    assert out.shape == ref.shape
    assert jnp.allclose(out, ref, atol=5e-2, rtol=5e-2), \
        "bf16 kernel mismatch vs reference"
    assert jnp.allclose(out_f32, ref, atol=5e-2, rtol=5e-2), \
        "f32 kernel mismatch vs reference"

    print("KERNEL_OK")
</pallas_src>

<mosaic_0001>
module attributes {stable_mosaic.version = 11 : i64} {
  func.func @layernorm_nlp_kernel(%arg0: i32, %arg1: memref<8x128xbf16, #tpu.memory_space<vmem>>, %arg2: memref<128x128xbf16, #tpu.memory_space<vmem>>, %arg3: memref<1x128xf32, #tpu.memory_space<vmem>>, %arg4: memref<1x128xf32, #tpu.memory_space<vmem>>, %arg5: memref<1x128xf32, #tpu.memory_space<vmem>>, %arg6: memref<128x128xbf16, #tpu.memory_space<vmem>>, %arg7: memref<1x128xf32, #tpu.memory_space<vmem>>, %arg8: memref<128x128xbf16, #tpu.memory_space<vmem>>, %arg9: memref<1x128xf32, #tpu.memory_space<vmem>>, %arg10: memref<8x128xf32, #tpu.memory_space<vmem>>) attributes {dimension_semantics = [#tpu.dimension_semantics<parallel>], iteration_bounds = array<i64: 1>, scalar_prefetch = 0 : i64, scratch_operands = 0 : i64, tpu.core_type = #tpu.core_type<tc>, window_params = [{transform_indices = @transform_0, window_bounds = array<i64: 8, 128>}, {pipeline_mode = #tpu.pipeline_mode<synchronous>, transform_indices = @transform_1, window_bounds = array<i64: 128, 128>}, {pipeline_mode = #tpu.pipeline_mode<synchronous>, transform_indices = @transform_2, window_bounds = array<i64: 1, 128>}, {pipeline_mode = #tpu.pipeline_mode<synchronous>, transform_indices = @transform_3, window_bounds = array<i64: 1, 128>}, {pipeline_mode = #tpu.pipeline_mode<synchronous>, transform_indices = @transform_4, window_bounds = array<i64: 1, 128>}, {pipeline_mode = #tpu.pipeline_mode<synchronous>, transform_indices = @transform_5, window_bounds = array<i64: 128, 128>}, {pipeline_mode = #tpu.pipeline_mode<synchronous>, transform_indices = @transform_6, window_bounds = array<i64: 1, 128>}, {pipeline_mode = #tpu.pipeline_mode<synchronous>, transform_indices = @transform_7, window_bounds = array<i64: 128, 128>}, {pipeline_mode = #tpu.pipeline_mode<synchronous>, transform_indices = @transform_8, window_bounds = array<i64: 1, 128>}, {transform_indices = @transform_9, window_bounds = array<i64: 8, 128>}]} {
    %c0 = arith.constant 0 : index
    %c0_0 = arith.constant 0 : index
    %0 = vector.load %arg1[%c0, %c0_0] : memref<8x128xbf16, #tpu.memory_space<vmem>>, vector<8x128xbf16>
    %c0_1 = arith.constant 0 : index
    %c0_2 = arith.constant 0 : index
    %1 = vector.load %arg2[%c0_1, %c0_2] : memref<128x128xbf16, #tpu.memory_space<vmem>>, vector<128x128xbf16>
    %cst = arith.constant dense<0.000000e+00> : vector<8x128xf32>
    %2 = tpu.matmul %0, %1, %cst {dimension_numbers = #tpu.dot_dimension_numbers<[1], [0], [0], [1], [0, 0, 1, 1], [], []>} : vector<8x128xbf16>, vector<128x128xbf16>, vector<8x128xf32> -> vector<8x128xf32>
    %c0_3 = arith.constant 0 : index
    %c0_4 = arith.constant 0 : index
    %3 = vector.load %arg3[%c0_3, %c0_4] : memref<1x128xf32, #tpu.memory_space<vmem>>, vector<1x128xf32>
    %4 = vector.broadcast %3 : vector<1x128xf32> to vector<8x128xf32>
    %5 = arith.addf %2, %4 : vector<8x128xf32>
    %cst_5 = arith.constant dense<0.000000e+00> : vector<8xf32>
    %6 = vector.multi_reduction <add>, %5, %cst_5 [1] : vector<8x128xf32> to vector<8xf32>
    %7 = vector.shape_cast %6 : vector<8xf32> to vector<8x1xf32>
    %8 = arith.mulf %5, %5 : vector<8x128xf32>
    %cst_6 = arith.constant dense<0.000000e+00> : vector<8xf32>
    %9 = vector.multi_reduction <add>, %8, %cst_6 [1] : vector<8x128xf32> to vector<8xf32>
    %10 = vector.shape_cast %9 : vector<8xf32> to vector<8x1xf32>
    %cst_7 = arith.constant 3.125000e-02 : f32
    %11 = vector.broadcast %cst_7 : f32 to vector<8x1xf32>
    %12 = arith.mulf %7, %11 : vector<8x1xf32>
    %cst_8 = arith.constant 3.125000e-02 : f32
    %13 = vector.broadcast %cst_8 : f32 to vector<8x1xf32>
    %14 = arith.mulf %10, %13 : vector<8x1xf32>
    %15 = arith.mulf %12, %12 : vector<8x1xf32>
    %16 = arith.subf %14, %15 : vector<8x1xf32>
    %17 = vector.broadcast %12 : vector<8x1xf32> to vector<8x128xf32>
    %18 = arith.subf %5, %17 : vector<8x128xf32>
    %cst_9 = arith.constant 9.99999974E-6 : f32
    %19 = vector.broadcast %cst_9 : f32 to vector<8x1xf32>
    %20 = arith.addf %16, %19 : vector<8x1xf32>
    %21 = math.rsqrt %20 : vector<8x1xf32>
    %22 = vector.broadcast %21 : vector<8x1xf32> to vector<8x128xf32>
    %23 = arith.mulf %18, %22 : vector<8x128xf32>
    %c0_10 = arith.constant 0 : index
    %c0_11 = arith.constant 0 : index
    %24 = vector.load %arg4[%c0_10, %c0_11] : memref<1x128xf32, #tpu.memory_space<vmem>>, vector<1x128xf32>
    %25 = vector.broadcast %24 : vector<1x128xf32> to vector<8x128xf32>
    %26 = arith.mulf %23, %25 : vector<8x128xf32>
    %c0_12 = arith.constant 0 : index
    %c0_13 = arith.constant 0 : index
    %27 = vector.load %arg5[%c0_12, %c0_13] : memref<1x128xf32, #tpu.memory_space<vmem>>, vector<1x128xf32>
    %28 = vector.broadcast %27 : vector<1x128xf32> to vector<8x128xf32>
    %29 = arith.addf %26, %28 : vector<8x128xf32>
    %30 = math.tanh %29 : vector<8x128xf32>
    %31 = arith.truncf %30 : vector<8x128xf32> to vector<8x128xbf16>
    %c0_14 = arith.constant 0 : index
    %c0_15 = arith.constant 0 : index
    %32 = vector.load %arg6[%c0_14, %c0_15] : memref<128x128xbf16, #tpu.memory_space<vmem>>, vector<128x128xbf16>
    %cst_16 = arith.constant dense<0.000000e+00> : vector<8x128xf32>
    %33 = tpu.matmul %31, %32, %cst_16 {dimension_numbers = #tpu.dot_dimension_numbers<[1], [0], [0], [1], [0, 0, 1, 1], [], []>} : vector<8x128xbf16>, vector<128x128xbf16>, vector<8x128xf32> -> vector<8x128xf32>
    %c0_17 = arith.constant 0 : index
    %c0_18 = arith.constant 0 : index
    %34 = vector.load %arg7[%c0_17, %c0_18] : memref<1x128xf32, #tpu.memory_space<vmem>>, vector<1x128xf32>
    %35 = vector.broadcast %34 : vector<1x128xf32> to vector<8x128xf32>
    %36 = arith.addf %33, %35 : vector<8x128xf32>
    %cst_19 = arith.constant 0.000000e+00 : f32
    %37 = vector.broadcast %cst_19 : f32 to vector<8x128xf32>
    %38 = arith.maximumf %36, %37 : vector<8x128xf32>
    %39 = arith.truncf %38 : vector<8x128xf32> to vector<8x128xbf16>
    %c0_20 = arith.constant 0 : index
    %c0_21 = arith.constant 0 : index
    %40 = vector.load %arg8[%c0_20, %c0_21] : memref<128x128xbf16, #tpu.memory_space<vmem>>, vector<128x128xbf16>
    %cst_22 = arith.constant dense<0.000000e+00> : vector<8x128xf32>
    %41 = tpu.matmul %39, %40, %cst_22 {dimension_numbers = #tpu.dot_dimension_numbers<[1], [0], [0], [1], [0, 0, 1, 1], [], []>} : vector<8x128xbf16>, vector<128x128xbf16>, vector<8x128xf32> -> vector<8x128xf32>
    %c0_23 = arith.constant 0 : index
    %c0_24 = arith.constant 0 : index
    %42 = vector.load %arg9[%c0_23, %c0_24] : memref<1x128xf32, #tpu.memory_space<vmem>>, vector<1x128xf32>
    %43 = vector.broadcast %42 : vector<1x128xf32> to vector<8x128xf32>
    %44 = arith.addf %41, %43 : vector<8x128xf32>
    %cst_25 = arith.constant 0.000000e+00 : f32
    %45 = vector.broadcast %cst_25 : f32 to vector<8x128xf32>
    %46 = arith.maximumf %44, %45 : vector<8x128xf32>
    %c0_26 = arith.constant 0 : index
    %c0_27 = arith.constant 0 : index
    %47 = vector.load %arg10[%c0_26, %c0_27] : memref<8x128xf32, #tpu.memory_space<vmem>>, vector<8x128xf32>
    tpu.vector_store %arg10[%c0_26, %c0_27], %46 {strides = array<i32>} : memref<8x128xf32, #tpu.memory_space<vmem>>, vector<8x128xf32>,
    return
  }
  func.func @transform_0(%arg0: i32) -> (i32, i32) {
    %c0_i32 = arith.constant 0 : i32
    %c0_i32_0 = arith.constant 0 : i32
    return %arg0, %c0_i32 : i32, i32
  }
  func.func @transform_1(%arg0: i32) -> (i32, i32) {
    %c0_i32 = arith.constant 0 : i32
    %c0_i32_0 = arith.constant 0 : i32
    %c0_i32_1 = arith.constant 0 : i32
    return %c0_i32, %c0_i32_0 : i32, i32
  }
  func.func @transform_2(%arg0: i32) -> (i32, i32) {
    %c0_i32 = arith.constant 0 : i32
    %c0_i32_0 = arith.constant 0 : i32
    %c0_i32_1 = arith.constant 0 : i32
    return %c0_i32, %c0_i32_0 : i32, i32
  }
  func.func @transform_3(%arg0: i32) -> (i32, i32) {
    %c0_i32 = arith.constant 0 : i32
    %c0_i32_0 = arith.constant 0 : i32
    %c0_i32_1 = arith.constant 0 : i32
    return %c0_i32, %c0_i32_0 : i32, i32
  }
  func.func @transform_4(%arg0: i32) -> (i32, i32) {
    %c0_i32 = arith.constant 0 : i32
    %c0_i32_0 = arith.constant 0 : i32
    %c0_i32_1 = arith.constant 0 : i32
    return %c0_i32, %c0_i32_0 : i32, i32
  }
  func.func @transform_5(%arg0: i32) -> (i32, i32) {
    %c0_i32 = arith.constant 0 : i32
    %c0_i32_0 = arith.constant 0 : i32
    %c0_i32_1 = arith.constant 0 : i32
    return %c0_i32, %c0_i32_0 : i32, i32
  }
  func.func @transform_6(%arg0: i32) -> (i32, i32) {
    %c0_i32 = arith.constant 0 : i32
    %c0_i32_0 = arith.constant 0 : i32
    %c0_i32_1 = arith.constant 0 : i32
    return %c0_i32, %c0_i32_0 : i32, i32
  }
  func.func @transform_7(%arg0: i32) -> (i32, i32) {
    %c0_i32 = arith.constant 0 : i32
    %c0_i32_0 = arith.constant 0 : i32
    %c0_i32_1 = arith.constant 0 : i32
    return %c0_i32, %c0_i32_0 : i32, i32
  }
  func.func @transform_8(%arg0: i32) -> (i32, i32) {
    %c0_i32 = arith.constant 0 : i32
    %c0_i32_0 = arith.constant 0 : i32
    %c0_i32_1 = arith.constant 0 : i32
    return %c0_i32, %c0_i32_0 : i32, i32
  }
  func.func @transform_9(%arg0: i32) -> (i32, i32) {
    %c0_i32 = arith.constant 0 : i32
    %c0_i32_0 = arith.constant 0 : i32
    return %arg0, %c0_i32 : i32, i32
  }
}

</mosaic_0001>

<llo_original>
// kernel: layernorm_nlp_forward.1
$region0: #{layernorm_nlp_forward.1}
  #allocation0 [shape = 'u32[]', space=smem, size = 0x4, offset = 0x4, fixed_abs, tag = 'smem constant byte address 0x4 - core index']
  #allocation1 [shape = 'u32[144,128]{1,0:T(1,128)}', space=vmem, size = 0x12000, scoped, tag = 'internal scratch']
  %s0 = inlined_call_operand.vmem [shape: bf16[8,128], index: 0, kind: input, shape index: {}]
  %s1 = inlined_call_operand.vmem [shape: bf16[128,128], index: 1, kind: input, shape index: {}]
  %s2 = inlined_call_operand.vmem [shape: f32[1,128], index: 2, kind: input, shape index: {}]
  %s3 = inlined_call_operand.vmem [shape: f32[1,128], index: 3, kind: input, shape index: {}]
  %s4 = inlined_call_operand.vmem [shape: f32[1,128], index: 4, kind: input, shape index: {}]
  %s5 = inlined_call_operand.vmem [shape: bf16[128,128], index: 5, kind: input, shape index: {}]
  %s6 = inlined_call_operand.vmem [shape: f32[1,128], index: 6, kind: input, shape index: {}]
  %s7 = inlined_call_operand.vmem [shape: bf16[128,128], index: 7, kind: input, shape index: {}]
  %s8 = inlined_call_operand.vmem [shape: f32[1,128], index: 8, kind: input, shape index: {}]
  %s9 = inlined_call_operand.hbm [shape: f32[8,128], index: 9, kind: output, shape index: {}]
  %s10 = sld [smem:[#allocation0]]
  $region46: #{layernorm_nlp_forward.1} parent=0
    _
  %s12 = ssub.s32 1, %s10
  %s13 = scalar_select 0, %s12, %s10
  $region1: #{layernorm_nlp_forward.1} parent=0
    #allocation2 [shape = 'u8[4096]{0}', space=vmem, size = 0x1000, scoped, tag = 'output window, operand 0, single buffered']
    #allocation3 [shape = 's32[1]{0}', space=sflag, size = 0x4, scoped, tag = 'scoped memory for layernorm_nlp_forward.1']
    %14 = vsyncpa [#allocation3], 0
    // Predicated region
    $region2: #{layernorm_nlp_forward.1} parent=1 // pred_check
      _
    $region3: #{layernorm_nlp_forward.1} parent=1 // pred_check_branch
      %16 = sbr.rel (0) target = $region5
    $region4: #{layernorm_nlp_forward.1} parent=1 // pred_region
      _
    $region5: #{layernorm_nlp_forward.1} parent=1 // pred_fallthru
      _
    // Predicated region
    $region6: #{layernorm_nlp_forward.1} parent=1 // pred_check
      _
    $region7: #{layernorm_nlp_forward.1} parent=1 // pred_check_branch
      %18 = sbr.rel (0) target = $region9
    $region8: #{layernorm_nlp_forward.1} parent=1 // pred_region
      _
    $region9: #{layernorm_nlp_forward.1} parent=1 // pred_fallthru
      _
    // Predicated region
    $region10: #{layernorm_nlp_forward.1} parent=1 // pred_check
      _
    $region11: #{layernorm_nlp_forward.1} parent=1 // pred_check_branch
      %20 = sbr.rel (0) target = $region13
    $region12: #{layernorm_nlp_forward.1} parent=1 // pred_region
      _
    $region13: #{layernorm_nlp_forward.1} parent=1 // pred_fallthru
      _
    // Predicated region
    $region14: #{layernorm_nlp_forward.1} parent=1 // pred_check
      _
    $region15: #{layernorm_nlp_forward.1} parent=1 // pred_check_branch
      %22 = sbr.rel (0) target = $region17
    $region16: #{layernorm_nlp_forward.1} parent=1 // pred_region
      _
    $region17: #{layernorm_nlp_forward.1} parent=1 // pred_fallthru
      _
    // Predicated region
    $region18: #{layernorm_nlp_forward.1} parent=1 // pred_check
      _
    $region19: #{layernorm_nlp_forward.1} parent=1 // pred_check_branch
      %24 = sbr.rel (0) target = $region21
    $region20: #{layernorm_nlp_forward.1} parent=1 // pred_region
      _
    $region21: #{layernorm_nlp_forward.1} parent=1 // pred_fallthru
      _
    // Predicated region
    $region22: #{layernorm_nlp_forward.1} parent=1 // pred_check
      _
    $region23: #{layernorm_nlp_forward.1} parent=1 // pred_check_branch
      %26 = sbr.rel (0) target = $region25
    $region24: #{layernorm_nlp_forward.1} parent=1 // pred_region
      _
    $region25: #{layernorm_nlp_forward.1} parent=1 // pred_fallthru
      _
    // Predicated region
    $region26: #{layernorm_nlp_forward.1} parent=1 // pred_check
      _
    $region27: #{layernorm_nlp_forward.1} parent=1 // pred_check_branch
      %28 = sbr.rel (0) target = $region29
    $region28: #{layernorm_nlp_forward.1} parent=1 // pred_region
      _
    $region29: #{layernorm_nlp_forward.1} parent=1 // pred_fallthru
      _
    // Predicated region
    $region30: #{layernorm_nlp_forward.1} parent=1 // pred_check
      _
    $region31: #{layernorm_nlp_forward.1} parent=1 // pred_check_branch
      %30 = sbr.rel (0) target = $region33
    $region32: #{layernorm_nlp_forward.1} parent=1 // pred_region
      _
    $region33: #{layernorm_nlp_forward.1} parent=1 // pred_fallthru
      _
    // Predicated region
    $region34: #{layernorm_nlp_forward.1} parent=1 // pred_check
      _
    $region35: #{layernorm_nlp_forward.1} parent=1 // pred_check_branch
      %32 = sbr.rel (0) target = $region37
    $region36: #{layernorm_nlp_forward.1} parent=1 // pred_region
      _
    $region37: #{layernorm_nlp_forward.1} parent=1 // pred_fallthru
      _
    %v34 = vld [vmem:[%s0] sm:$0xf]
    %v35 = vld [vmem:[%s1] sm:$0xf]
    %v36 = vld [vmem:[%s1 + $0x4] sm:$0xf]
    %v37 = vld [vmem:[%s1 + $0x8] sm:$0xf]
    %v38 = vld [vmem:[%s1 + $0xc] sm:$0xf]
    %v39 = vld [vmem:[%s1 + $0x10] sm:$0xf]
    %v40 = vld [vmem:[%s1 + $0x14] sm:$0xf]
    %v41 = vld [vmem:[%s1 + $0x18] sm:$0xf]
    %v42 = vld [vmem:[%s1 + $0x1c] sm:$0xf]
    %v43 = vld [vmem:[%s1 + $0x20] sm:$0xf]
    %v44 = vld [vmem:[%s1 + $0x24] sm:$0xf]
    %v45 = vld [vmem:[%s1 + $0x28] sm:$0xf]
    %v46 = vld [vmem:[%s1 + $0x2c] sm:$0xf]
    %v47 = vld [vmem:[%s1 + $0x30] sm:$0xf]
    %v48 = vld [vmem:[%s1 + $0x34] sm:$0xf]
    %v49 = vld [vmem:[%s1 + $0x38] sm:$0xf]
    %v50 = vld [vmem:[%s1 + $0x3c] sm:$0xf]
    %v51 = vld [vmem:[%s2] sm:$0x1]
    %v53 = vlaneseq
    %v54 = vshrl.u32 %v53, 7
    %v55 = vsub.s32 0, %v54
    %v56 = vrot.slane %v51, %v55
    %v74 = vunpack.c.l.b16 %v35
    %v75 = vunpack.c.l.b16 %v36
    %v76 = vunpack.c.l.b16 %v37
    %v77 = vunpack.c.l.b16 %v38
    %v78 = vunpack.c.l.b16 %v39
    %v79 = vunpack.c.l.b16 %v40
    %v80 = vunpack.c.l.b16 %v41
    %v81 = vunpack.c.l.b16 %v42
    %v82 = vunpack.c.l.b16 %v43
    %v83 = vunpack.c.l.b16 %v44
    %v84 = vunpack.c.l.b16 %v45
    %v85 = vunpack.c.l.b16 %v46
    %v86 = vunpack.c.l.b16 %v47
    %v87 = vunpack.c.l.b16 %v48
    %v88 = vunpack.c.l.b16 %v49
    %v89 = vunpack.c.l.b16 %v50
    %v90 = vpack.c.b16 %v75, %v74
    %v91 = vpack.c.b16 %v77, %v76
    %v92 = vpack.c.b16 %v79, %v78
    %v93 = vpack.c.b16 %v81, %v80
    %v94 = vpack.c.b16 %v83, %v82
    %v95 = vpack.c.b16 %v85, %v84
    %v96 = vpack.c.b16 %v87, %v86
    %v97 = vpack.c.b16 %v89, %v88
    %106 = vmatprep.subr.bf16.mxu0 0
    %107 = vmatpush1.bf16.msra.mxu0 %v90
    %108 = vmatprep.subr.bf16.mxu0 0
    %109 = vmatpush1.bf16.msra.mxu0 %v91
    %110 = vmatprep.subr.bf16.mxu0 0
    %111 = vmatpush1.bf16.msra.mxu0 %v92
    %112 = vmatprep.subr.bf16.mxu0 0
    %113 = vmatpush1.bf16.msra.mxu0 %v93
    %114 = vmatprep.subr.bf16.mxu0 0
    %115 = vmatpush1.bf16.msra.mxu0 %v94
    %116 = vmatprep.subr.bf16.mxu0 0
    %117 = vmatpush1.bf16.msra.mxu0 %v95
    %118 = vmatprep.subr.bf16.mxu0 0
    %119 = vmatpush1.bf16.msra.mxu0 %v96
    %120 = vmatprep.subr.bf16.mxu0 0
    %121 = vmatpush1.bf16.msra.mxu0 %v97
    %122 = vmatprep.subr.bf16.mxu0 0
    %123 = vmatpush1.bf16.msra.mxu0 0
    %124 = vmatprep.subr.bf16.mxu0 0
    %125 = vmatpush1.bf16.msra.mxu0 0
    %126 = vmatprep.subr.bf16.mxu0 0
    %127 = vmatpush1.bf16.msra.mxu0 0
    %128 = vmatprep.subr.bf16.mxu0 0
    %129 = vmatpush1.bf16.msra.mxu0 0
    %130 = vmatprep.subr.bf16.mxu0 0
    %131 = vmatpush1.bf16.msra.mxu0 0
    %132 = vmatprep.subr.bf16.mxu0 0
    %133 = vmatpush1.bf16.msra.mxu0 0
    %134 = vmatprep.subr.bf16.mxu0 0
    %135 = vmatpush1.bf16.msra.mxu0 0
    %136 = vmatprep.subr.bf16.mxu0 0
    %137 = vmatpush1.bf16.msra.mxu0 0
    %138 = vmatprep.mubr.bf16.mxu0 0
    %139 = vmatmul.mubr.bf16.gmra.mrb[0].mxu0 %v34
    %v140 = vpop.f32.mrb[0].mxu0
    %v141 = vadd.f32 %v56, %v140
    %v142 = vpop.f32.mrb[0].mxu0
    %v143 = vpop.f32.mrb[0].mxu0
    %v144 = vpop.f32.mrb[0].mxu0
    %145 = vdwg.mxu0
    %146 = vadd.xlane.f32.xlu0 %v141
    %v147 = vpop.xlane.xlu0 %146
    %v148 = vmul.f32 %v141, %v141
    %149 = vadd.xlane.f32.xlu0 %v148
    %v150 = vpop.xlane.xlu0 %149
    %v151 = vmul.f32 %v147, 0.03125
    %v152 = vmul.f32 %v150, 0.03125
    %v153 = vmul.f32 %v151, %v151
    %v154 = vsub.f32 %v152, %v153
    %v155 = vsub.f32 %v141, %v151
    %v156 = vadd.f32 %v154, 1e-05
    %v157 = vrsqrt.pop %v156
    %v158 = vmul.f32 %v155, %v157
    %v159 = vld [vmem:[%s3] sm:$0x1]
    %v161 = vlaneseq
    %v162 = vshrl.u32 %v161, 7
    %v163 = vsub.s32 0, %v162
    %v164 = vrot.slane %v159, %v163
    %v166 = vmul.f32 %v158, %v164
    %v167 = vld [vmem:[%s4] sm:$0x1]
    %v169 = vlaneseq
    %v170 = vshrl.u32 %v169, 7
    %v171 = vsub.s32 0, %v170
    %v172 = vrot.slane %v167, %v171
    %v174 = vadd.f32 %v166, %v172
    %v175 = vtanh.pop %v174
    %v176 = vpack.c.bf16 %v175, %v175
    %v177 = vld [vmem:[%s5] sm:$0xf]
    %v178 = vld [vmem:[%s5 + $0x4] sm:$0xf]
    %v179 = vld [vmem:[%s5 + $0x8] sm:$0xf]
    %v180 = vld [vmem:[%s5 + $0xc] sm:$0xf]
    %v181 = vld [vmem:[%s5 + $0x10] sm:$0xf]
    %v182 = vld [vmem:[%s5 + $0x14] sm:$0xf]
    %v183 = vld [vmem:[%s5 + $0x18] sm:$0xf]
    %v184 = vld [vmem:[%s5 + $0x1c] sm:$0xf]
    %v185 = vld [vmem:[%s5 + $0x20] sm:$0xf]
    %v186 = vld [vmem:[%s5 + $0x24] sm:$0xf]
    %v187 = vld [vmem:[%s5 + $0x28] sm:$0xf]
    %v188 = vld [vmem:[%s5 + $0x2c] sm:$0xf]
    %v189 = vld [vmem:[%s5 + $0x30] sm:$0xf]
    %v190 = vld [vmem:[%s5 + $0x34] sm:$0xf]
    %v191 = vld [vmem:[%s5 + $0x38] sm:$0xf]
    %v192 = vld [vmem:[%s5 + $0x3c] sm:$0xf]
    %v193 = vld [vmem:[%s6] sm:$0x1]
    %v195 = vlaneseq
    %v196 = vshrl.u32 %v195, 7
    %v197 = vsub.s32 0, %v196
    %v198 = vrot.slane %v193, %v197
    %v216 = vunpack.c.l.b16 %v177
    %v217 = vunpack.c.l.b16 %v178
    %v218 = vunpack.c.l.b16 %v179
    %v219 = vunpack.c.l.b16 %v180
    %v220 = vunpack.c.l.b16 %v181
    %v221 = vunpack.c.l.b16 %v182
    %v222 = vunpack.c.l.b16 %v183
    %v223 = vunpack.c.l.b16 %v184
    %v224 = vunpack.c.l.b16 %v185
    %v225 = vunpack.c.l.b16 %v186
    %v226 = vunpack.c.l.b16 %v187
    %v227 = vunpack.c.l.b16 %v188
    %v228 = vunpack.c.l.b16 %v189
    %v229 = vunpack.c.l.b16 %v190
    %v230 = vunpack.c.l.b16 %v191
    %v231 = vunpack.c.l.b16 %v192
    %v232 = vpack.c.b16 %v217, %v216
    %v233 = vpack.c.b16 %v219, %v218
    %v234 = vpack.c.b16 %v221, %v220
    %v235 = vpack.c.b16 %v223, %v222
    %v236 = vpack.c.b16 %v225, %v224
    %v237 = vpack.c.b16 %v227, %v226
    %v238 = vpack.c.b16 %v229, %v228
    %v239 = vpack.c.b16 %v231, %v230
    %248 = vmatprep.subr.bf16.mxu0 0
    %249 = vmatpush1.bf16.msra.mxu0 %v232
    %250 = vmatprep.subr.bf16.mxu0 0
    %251 = vmatpush1.bf16.msra.mxu0 %v233
    %252 = vmatprep.subr.bf16.mxu0 0
    %253 = vmatpush1.bf16.msra.mxu0 %v234
    %254 = vmatprep.subr.bf16.mxu0 0
    %255 = vmatpush1.bf16.msra.mxu0 %v235
    %256 = vmatprep.subr.bf16.mxu0 0
    %257 = vmatpush1.bf16.msra.mxu0 %v236
    %258 = vmatprep.subr.bf16.mxu0 0
    %259 = vmatpush1.bf16.msra.mxu0 %v237
    %260 = vmatprep.subr.bf16.mxu0 0
    %261 = vmatpush1.bf16.msra.mxu0 %v238
    %262 = vmatprep.subr.bf16.mxu0 0
    %263 = vmatpush1.bf16.msra.mxu0 %v239
    %264 = vmatprep.subr.bf16.mxu0 0
    %265 = vmatpush1.bf16.msra.mxu0 0
    %266 = vmatprep.subr.bf16.mxu0 0
    %267 = vmatpush1.bf16.msra.mxu0 0
    %268 = vmatprep.subr.bf16.mxu0 0
    %269 = vmatpush1.bf16.msra.mxu0 0
    %270 = vmatprep.subr.bf16.mxu0 0
    %271 = vmatpush1.bf16.msra.mxu0 0
    %272 = vmatprep.subr.bf16.mxu0 0
    %273 = vmatpush1.bf16.msra.mxu0 0
    %274 = vmatprep.subr.bf16.mxu0 0
    %275 = vmatpush1.bf16.msra.mxu0 0
    %276 = vmatprep.subr.bf16.mxu0 0
    %277 = vmatpush1.bf16.msra.mxu0 0
    %278 = vmatprep.subr.bf16.mxu0 0
    %279 = vmatpush1.bf16.msra.mxu0 0
    %280 = vmatprep.mubr.bf16.mxu0 0
    %281 = vmatmul.mubr.bf16.gmra.mrb[0].mxu0 %v176
    %v282 = vpop.f32.mrb[0].mxu0
    %v283 = vadd.f32 %v198, %v282
    %v284 = vpop.f32.mrb[0].mxu0
    %v285 = vpop.f32.mrb[0].mxu0
    %v286 = vpop.f32.mrb[0].mxu0
    %287 = vdwg.mxu0
    %v288 = vmax.f32 %v283, 0.0
    %v289 = vpack.c.bf16 %v288, %v288
    %v290 = vld [vmem:[%s7] sm:$0xf]
    %v291 = vld [vmem:[%s7 + $0x4] sm:$0xf]
    %v292 = vld [vmem:[%s7 + $0x8] sm:$0xf]
    %v293 = vld [vmem:[%s7 + $0xc] sm:$0xf]
    %v294 = vld [vmem:[%s7 + $0x10] sm:$0xf]
    %v295 = vld [vmem:[%s7 + $0x14] sm:$0xf]
    %v296 = vld [vmem:[%s7 + $0x18] sm:$0xf]
    %v297 = vld [vmem:[%s7 + $0x1c] sm:$0xf]
    %v298 = vld [vmem:[%s7 + $0x20] sm:$0xf]
    %v299 = vld [vmem:[%s7 + $0x24] sm:$0xf]
    %v300 = vld [vmem:[%s7 + $0x28] sm:$0xf]
    %v301 = vld [vmem:[%s7 + $0x2c] sm:$0xf]
    %v302 = vld [vmem:[%s7 + $0x30] sm:$0xf]
    %v303 = vld [vmem:[%s7 + $0x34] sm:$0xf]
    %v304 = vld [vmem:[%s7 + $0x38] sm:$0xf]
    %v305 = vld [vmem:[%s7 + $0x3c] sm:$0xf]
    %v306 = vld [vmem:[%s8] sm:$0x1]
    %v308 = vlaneseq
    %v309 = vshrl.u32 %v308, 7
    %v310 = vsub.s32 0, %v309
    %v311 = vrot.slane %v306, %v310
    %v329 = vunpack.c.l.b16 %v290
    %v330 = vunpack.c.l.b16 %v291
    %v331 = vunpack.c.l.b16 %v292
    %v332 = vunpack.c.l.b16 %v293
    %v333 = vunpack.c.l.b16 %v294
    %v334 = vunpack.c.l.b16 %v295
    %v335 = vunpack.c.l.b16 %v296
    %v336 = vunpack.c.l.b16 %v297
    %v337 = vunpack.c.l.b16 %v298
    %v338 = vunpack.c.l.b16 %v299
    %v339 = vunpack.c.l.b16 %v300
    %v340 = vunpack.c.l.b16 %v301
    %v341 = vunpack.c.l.b16 %v302
    %v342 = vunpack.c.l.b16 %v303
    %v343 = vunpack.c.l.b16 %v304
    %v344 = vunpack.c.l.b16 %v305
    %v345 = vpack.c.b16 %v330, %v329
    %v346 = vpack.c.b16 %v332, %v331
    %v347 = vpack.c.b16 %v334, %v333
    %v348 = vpack.c.b16 %v336, %v335
    %v349 = vpack.c.b16 %v338, %v337
    %v350 = vpack.c.b16 %v340, %v339
    %v351 = vpack.c.b16 %v342, %v341
    %v352 = vpack.c.b16 %v344, %v343
    %361 = vmatprep.subr.bf16.mxu0 0
    %362 = vmatpush1.bf16.msra.mxu0 %v345
    %363 = vmatprep.subr.bf16.mxu0 0
    %364 = vmatpush1.bf16.msra.mxu0 %v346
    %365 = vmatprep.subr.bf16.mxu0 0
    %366 = vmatpush1.bf16.msra.mxu0 %v347
    %367 = vmatprep.subr.bf16.mxu0 0
    %368 = vmatpush1.bf16.msra.mxu0 %v348
    %369 = vmatprep.subr.bf16.mxu0 0
    %370 = vmatpush1.bf16.msra.mxu0 %v349
    %371 = vmatprep.subr.bf16.mxu0 0
    %372 = vmatpush1.bf16.msra.mxu0 %v350
    %373 = vmatprep.subr.bf16.mxu0 0
    %374 = vmatpush1.bf16.msra.mxu0 %v351
    %375 = vmatprep.subr.bf16.mxu0 0
    %376 = vmatpush1.bf16.msra.mxu0 %v352
    %377 = vmatprep.subr.bf16.mxu0 0
    %378 = vmatpush1.bf16.msra.mxu0 0
    %379 = vmatprep.subr.bf16.mxu0 0
    %380 = vmatpush1.bf16.msra.mxu0 0
    %381 = vmatprep.subr.bf16.mxu0 0
    %382 = vmatpush1.bf16.msra.mxu0 0
    %383 = vmatprep.subr.bf16.mxu0 0
    %384 = vmatpush1.bf16.msra.mxu0 0
    %385 = vmatprep.subr.bf16.mxu0 0
    %386 = vmatpush1.bf16.msra.mxu0 0
    %387 = vmatprep.subr.bf16.mxu0 0
    %388 = vmatpush1.bf16.msra.mxu0 0
    %389 = vmatprep.subr.bf16.mxu0 0
    %390 = vmatpush1.bf16.msra.mxu0 0
    %391 = vmatprep.subr.bf16.mxu0 0
    %392 = vmatpush1.bf16.msra.mxu0 0
    %393 = vmatprep.mubr.bf16.mxu0 0
    %394 = vmatmul.mubr.bf16.gmra.mrb[0].mxu0 %v289
    %v395 = vpop.f32.mrb[0].mxu0
    %v396 = vadd.f32 %v311, %v395
    %v397 = vpop.f32.mrb[0].mxu0
    %v398 = vpop.f32.mrb[0].mxu0
    %v399 = vpop.f32.mrb[0].mxu0
    %400 = vdwg.mxu0
    %v401 = vmax.f32 %v396, 0.0
    %402 = vst [vmem:[#allocation2] sm:$0xff] %v401
    // Predicated region
    $region38: #{layernorm_nlp_forward.1} parent=1 // pred_check
      _
    $region39: #{layernorm_nlp_forward.1} parent=1 // pred_check_branch
      %404 = sbr.rel (0) target = $region41
    $region40: #{layernorm_nlp_forward.1} parent=1 // pred_region
      %s406 = ssub.s32 128, 128
      %407 = vsyncadd [#allocation3], %s406
      %s409 = sshll.u32 [#allocation2], 4
      %s410 = int_to_ptr.vmem [resolvable:$true] %s409
      %412 = dma.vmem_to_hbm [thread:$0]  %s410, 128, %s9, [#allocation3]
    $region41: #{layernorm_nlp_forward.1} parent=1 // pred_fallthru
      _
    // Predicated region
    $region42: #{layernorm_nlp_forward.1} parent=1 // pred_check
      _
    $region43: #{layernorm_nlp_forward.1} parent=1 // pred_check_branch
      %414 = sbr.rel (0) target = $region45
    $region44: #{layernorm_nlp_forward.1} parent=1 // pred_region
      %415 = dma.done [#allocation3], 128
    $region45: #{layernorm_nlp_forward.1} parent=1 // pred_fallthru
      _
    %416 = vsyncpa [#allocation3], 1

</llo_original>
